<compile_context>
chip_gen: v7x
topology: tpu7x:2x2x1
jax: 0.10.0
libtpu: 0.0.40
codegen_flags: <defaults>
</compile_context>

<pallas_src>
import math
import functools

import jax
import jax.numpy as jnp
from jax.experimental import pallas as pl
from jax.experimental.pallas import tpu as pltpu


# ----------------------------------------------------------------------------- tiling helpers
def _round_up(x, m):
    return ((x + m - 1) // m) * m


def _m_tiling(M):
    """(Mp, TM): don't pad tiny M up to 128; 256-row tiles for large M."""
    if M <= 256:
        tm = _round_up(max(M, 8), 16)          # bf16-friendly sublane multiple
        return tm, tm
    tm = 256
    return _round_up(M, tm), tm


def _n_tiling(N):
    npad = _round_up(N, 128)
    tn = 256 if npad % 256 == 0 else 128       # 256-wide N tiles when they fit exactly
    return npad, tn


def _k_tiling(K):
    """(Kp, TK): single K step when K <= 2048, else the largest TK<=2048 that keeps
    K padding minimal.  TK is always a multiple of 128."""
    kp0 = _round_up(K, 128)
    if kp0 <= 2048:
        return kp0, kp0
    best_kp, best_tk = None, None
    for mult in range(16, 1, -1):              # TK in {2048, 1920, ..., 256}
        tk = 128 * mult
        kp = _round_up(K, tk)
        if best_kp is None or kp < best_kp or (kp == best_kp and tk > best_tk):
            best_kp, best_tk = kp, tk
    return best_kp, best_tk


# ----------------------------------------------------------------------------- Pallas kernels
def _mm_bias_kernel(a_ref, b_ref, bias_ref, o_ref, *, relu):
    """out[i,j] = act( sum_k a[i,k] @ b[k,j] + bias[j] ); the f32 output block is
    resident across the k (reduction) grid axis, so accumulate directly into it."""
    k = pl.program_id(2)

    @pl.when(k == 0)
    def _():
        o_ref[...] = jnp.zeros_like(o_ref)

    o_ref[...] += jnp.dot(a_ref[...], b_ref[...],
                          preferred_element_type=jnp.float32)

    @pl.when(k == pl.num_programs(2) - 1)
    def _():
        y = o_ref[...] + bias_ref[...]
        if relu:
            y = jnp.maximum(y, 0.0)
        o_ref[...] = y


def _mm_bias_res_kernel(a_ref, b_ref, bias_ref, res_ref, o_ref, *, relu):
    """Same as above but the epilogue also adds a residual tile (fused bottleneck
    skip-connection add + ReLU)."""
    k = pl.program_id(2)

    @pl.when(k == 0)
    def _():
        o_ref[...] = jnp.zeros_like(o_ref)

    o_ref[...] += jnp.dot(a_ref[...], b_ref[...],
                          preferred_element_type=jnp.float32)

    @pl.when(k == pl.num_programs(2) - 1)
    def _():
        y = o_ref[...] + bias_ref[...] + res_ref[...]
        if relu:
            y = jnp.maximum(y, 0.0)
        o_ref[...] = y


def _fused_matmul(a, b_p, bias_p, n_out, relu, res=None):
    """a: (M, K) bf16; b_p: (Kp, Np) bf16 (pre-padded, BN scale folded in);
    bias_p: (1, Np) f32; res: optional (M, n_out) f32 residual added in the epilogue.
    Returns (M, n_out) f32."""
    M, K = a.shape
    Kp, Np = b_p.shape
    Mp, TM = _m_tiling(M)
    kp_chk, TK = _k_tiling(K)
    assert kp_chk == Kp, "weight padding and activation padding disagree"
    TN = 256 if Np % 256 == 0 else 128

    if (Mp, Kp) != (M, K):
        a = jnp.pad(a, ((0, Mp - M), (0, Kp - K)))

    grid = (Mp // TM, Np // TN, Kp // TK)

    bytes_accessed = Mp * Kp * 2 + Kp * Np * 2 + Mp * Np * 4
    in_specs = [
        pl.BlockSpec((TM, TK), lambda i, j, k: (i, k)),
        pl.BlockSpec((TK, TN), lambda i, j, k: (k, j)),
        pl.BlockSpec((1, TN), lambda i, j, k: (0, j)),
    ]
    operands = [a, b_p, bias_p]
    kern = _mm_bias_kernel

    if res is not None:
        if res.shape != (Mp, Np):
            res = jnp.pad(res, ((0, Mp - M), (0, Np - n_out)))
        in_specs.append(pl.BlockSpec((TM, TN), lambda i, j, k: (i, j)))
        operands.append(res)
        bytes_accessed += Mp * Np * 4
        kern = _mm_bias_res_kernel

    cost = pl.CostEstimate(flops=2 * Mp * Np * Kp, transcendentals=0,
                           bytes_accessed=bytes_accessed)

    out = pl.pallas_call(
        functools.partial(kern, relu=relu),
        out_shape=jax.ShapeDtypeStruct((Mp, Np), jnp.float32),
        grid_spec=pltpu.PrefetchScalarGridSpec(
            num_scalar_prefetch=0,
            grid=grid,
            in_specs=in_specs,
            out_specs=pl.BlockSpec((TM, TN), lambda i, j, k: (i, j)),
        ),
        compiler_params=pltpu.CompilerParams(
            dimension_semantics=("parallel", "parallel", "arbitrary"),
            vmem_limit_bytes=64 << 20),
        cost_estimate=cost,
    )(*operands)

    if (Mp, Np) != (M, n_out):
        out = out[:M, :n_out]
    return out


@functools.partial(jax.jit,
                   static_argnames=("kh", "kw", "n_out", "stride", "padding", "relu"))
def conv2d_fused(x, w_p, bias_p, res=None, *, kh, kw, n_out, stride=1, padding=0,
                 relu=False):
    """x: (B,H,W,Cin) f32.  w_p: (Kp, Np) bf16 pre-padded weight; bias_p: (1, Np) f32;
    res: optional (B,Hout,Wout,n_out) f32 residual fused into the epilogue."""
    B, H, W, Cin = x.shape
    Hout = (H + 2 * padding - kh) // stride + 1
    Wout = (W + 2 * padding - kw) // stride + 1

    xb = x.astype(jnp.bfloat16)                 # feed the MXU bf16, halve DMA bytes
    if padding:
        xb = jnp.pad(xb, ((0, 0), (padding, padding), (padding, padding), (0, 0)))

    if kh == 1 and kw == 1:
        a = xb if stride == 1 else xb[:, ::stride, ::stride, :]
        a = a.reshape(B * Hout * Wout, Cin)
    else:
        # TODO(synk): explicit im2col (in bf16); an implicit in-kernel window gather
        #             (kh*kw reduction grid axis) would cut activation HBM traffic
        #             by kh*kw but is omitted here for lowering robustness.
        cols = [xb[:, i:i + stride * Hout:stride, j:j + stride * Wout:stride, :]
                for i in range(kh) for j in range(kw)]
        a = jnp.concatenate(cols, axis=-1).reshape(B * Hout * Wout, kh * kw * Cin)

    res2d = None if res is None else res.reshape(B * Hout * Wout, n_out).astype(jnp.float32)
    y = _fused_matmul(a, w_p, bias_p, n_out, relu, res=res2d)
    return y.reshape(B, Hout, Wout, n_out)


def apply_conv(x, p, *, stride=1, padding=0, relu=False, res=None):
    return conv2d_fused(x, p["w"], p["bias"], res, kh=p["kh"], kw=p["kw"],
                        n_out=p["cout"], stride=stride, padding=padding, relu=relu)


# ----------------------------------------------------------------------------- JAX glue ops
def maxpool_nhwc(x, k, stride=None, padding=0):
    stride = stride or k
    return jax.lax.reduce_window(
        x, jnp.array(-jnp.inf, x.dtype), jax.lax.max,
        window_dimensions=(1, k, k, 1),
        window_strides=(1, stride, stride, 1),
        padding=((0, 0), (padding, padding), (padding, padding), (0, 0)))


def bilinear_upsample(x, scale):
    B, H, W, C = x.shape
    return jax.image.resize(x, (B, H * scale, W * scale, C), method="bilinear")


# ----------------------------------------------------------------------------- parameters
class ParamGen:
    def __init__(self, seed):
        self._key = jax.random.PRNGKey(seed)
        self._i = 0

    def normal(self, shape):
        self._i += 1
        return jax.random.normal(jax.random.fold_in(self._key, self._i), shape, jnp.float32)


def _pack_conv(w, scale, shift):
    """Fold BN scale into the weights, reshape to (K, N), pad to (Kp, Np), cast bf16."""
    KH, KW, Cin, Cout = w.shape
    K = KH * KW * Cin
    Kp, _ = _k_tiling(K)
    Np, _ = _n_tiling(Cout)
    wm = w.reshape(K, Cout) * scale[None, :]
    wm = jnp.pad(wm, ((0, Kp - K), (0, Np - Cout))).astype(jnp.bfloat16)
    bias = jnp.pad(shift.reshape(1, Cout), ((0, 0), (0, Np - Cout))).astype(jnp.float32)
    return {"w": wm, "bias": bias, "kh": KH, "kw": KW, "cout": Cout}


def conv_bn_params(gen, cin, cout, k, bias=False, eps=1e-5):
    std = math.sqrt(2.0 / (k * k * cin))
    w = gen.normal((k, k, cin, cout)) * std
    b = gen.normal((cout,)) * 0.01 if bias else jnp.zeros((cout,), jnp.float32)
    gamma = 1.0 + 0.1 * gen.normal((cout,))
    beta = 0.1 * gen.normal((cout,))
    mean = 0.1 * gen.normal((cout,))
    var = 1.0 + 0.1 * jnp.abs(gen.normal((cout,)))
    scale = gamma / jnp.sqrt(var + eps)
    shift = beta + (b - mean) * scale
    return _pack_conv(w, scale, shift)


def conv_params(gen, cin, cout, k, bias=True):
    std = math.sqrt(2.0 / (k * k * cin))
    w = gen.normal((k, k, cin, cout)) * std
    b = gen.normal((cout,)) * 0.01 if bias else jnp.zeros((cout,), jnp.float32)
    return _pack_conv(w, jnp.ones((cout,), jnp.float32), b)


def make_resnet101_encoder_params(gen):
    p = {"conv1": conv_bn_params(gen, 3, 64, 7)}
    layers_cfg = [(64, 3, 1), (128, 4, 2), (256, 23, 2), (512, 3, 2)]   # ResNet-101
    inplanes, layers = 64, []
    for planes, blocks, stride in layers_cfg:
        blist = []
        for bi in range(blocks):
            s = stride if bi == 0 else 1
            bp = {"conv1": conv_bn_params(gen, inplanes, planes, 1),
                  "conv2": conv_bn_params(gen, planes, planes, 3),
                  "conv3": conv_bn_params(gen, planes, planes * 4, 1),
                  "stride": s}
            if bi == 0 and (s != 1 or inplanes != planes * 4):
                bp["down"] = conv_bn_params(gen, inplanes, planes * 4, 1)
            blist.append(bp)
            inplanes = planes * 4
        layers.append(blist)
    p["layers"] = layers
    return p


def make_decoder_params(gen, n_classes, channels=(64, 256, 512, 1024, 2048)):
    cat_ch = channels[0]
    up_ch = cat_ch * len(channels)          # 320
    num_dec = len(channels) - 1             # 4
    dec_blocks = []
    for i in range(num_dec):
        npe = num_dec - i                   # num_prev_encoders
        conns = []
        for j in range(npe):                # MaxConvBnReLU connections
            ks = None if j == npe - 1 else 2 ** (npe - 1 - j)
            conns.append({"kind": "max", "pool": ks,
                          "conv": conv_bn_params(gen, channels[j], cat_ch, 3, bias=True)})
        for j in range(npe, len(channels)):  # UpConvBnReLU connections
            in_ch = channels[-1] if j == num_dec else up_ch
            conns.append({"kind": "up", "scale": 2 ** (j - npe + 1),
                          "conv": conv_bn_params(gen, in_ch, cat_ch, 3, bias=True)})
        agg = conv_bn_params(gen, up_ch, up_ch, 3, bias=True)
        dec_blocks.append({"conns": conns, "agg": agg})
    deepsup = []
    for i in range(num_dec, -1, -1):
        if i == 0:
            deepsup.append({"conv": conv_params(gen, up_ch, n_classes, 3), "scale": None})
        else:
            in_ch = channels[-1] if i == num_dec else up_ch
            deepsup.append({"conv": conv_params(gen, in_ch, n_classes, 3), "scale": 2 ** i})
    cls_conv = conv_params(gen, channels[-1], 2, 1)
    return {"dec_blocks": dec_blocks, "deepsup": deepsup, "cls_conv": cls_conv}


# ----------------------------------------------------------------------------- forward pass
def bottleneck_forward(bp, x):
    y = apply_conv(x, bp["conv1"], stride=1, padding=0, relu=True)
    y = apply_conv(y, bp["conv2"], stride=bp["stride"], padding=1, relu=True)
    if "down" in bp:
        idt = apply_conv(x, bp["down"], stride=bp["stride"], padding=0, relu=False)
    else:
        idt = x
    # residual add + ReLU fused into the conv3 matmul epilogue
    return apply_conv(y, bp["conv3"], stride=1, padding=0, relu=True, res=idt)


def encoder_forward(p, x):
    enc = []
    y = apply_conv(x, p["conv1"], stride=2, padding=3, relu=True)     # conv1+bn1+relu
    enc.append(y)
    y = maxpool_nhwc(y, 3, stride=2, padding=1)                       # resnet maxpool
    for layer in p["layers"]:
        for bp in layer:
            y = bottleneck_forward(bp, y)
        enc.append(y)
    return enc                                                        # 64,256,512,1024,2048 ch


def decoder_forward(p, enc_outputs, class_guided=True):
    prev = list(enc_outputs)
    out = {}
    if class_guided:
        # TODO(synk): Dropout(p=0.5) is identity (inference semantics).
        cls_logits = apply_conv(prev[-1], p["cls_conv"], stride=1, padding=0, relu=False)
        cls = jax.nn.sigmoid(jnp.max(cls_logits, axis=(1, 2)))        # AdaptiveMaxPool2d(1)+Sigmoid
        out["cls"] = cls
        class_preds = jnp.argmax(cls, axis=1).astype(jnp.float32)[:, None]   # (B,1)

    num_dec = len(p["dec_blocks"])
    for i, block in enumerate(p["dec_blocks"]):
        maps = []
        for j, con in enumerate(block["conns"]):
            x = prev[j]
            if con["kind"] == "max":
                if con["pool"] is not None:
                    x = maxpool_nhwc(x, con["pool"])
            else:
                x = bilinear_upsample(x, con["scale"])
            maps.append(apply_conv(x, con["conv"], stride=1, padding=1, relu=True))
        cat = jnp.concatenate(maps, axis=-1)
        prev[num_dec - 1 - i] = apply_conv(cat, block["agg"], stride=1, padding=1, relu=True)

    prev = prev[::-1]
    for i in range(len(prev)):
        ds = p["deepsup"][i]
        y = apply_conv(prev[i], ds["conv"], stride=1, padding=1, relu=False)
        if ds["scale"] is not None:
            y = bilinear_upsample(y, ds["scale"])
        out["final_pred" if i == len(prev) - 1 else f"aux_head{i}"] = y

    if class_guided:
        for k in out:
            if k != "cls":   # einsum('ijk,ij->ijk', seg, cls): scale each map by predicted class idx
                out[k] = out[k] * class_preds[:, None, None, :]
    return out


def resnet101_unet3plus_forward(params, x_nchw, output_size=None):
    x = jnp.transpose(x_nchw, (0, 2, 3, 1))        # NCHW -> NHWC
    enc = encoder_forward(params["encoder"], x)
    out = decoder_forward(params["decoder"], enc, class_guided=True)
    for k in out:                                  # back to NCHW like PyTorch
        if k != "cls":
            out[k] = jnp.transpose(out[k], (0, 3, 1, 2))
    if output_size is not None:
        for k in out:
            if k != "cls":
                B, C, _, _ = out[k].shape
                nhwc = jnp.transpose(out[k], (0, 2, 3, 1))
                nhwc = jax.image.resize(nhwc, (B, output_size[0], output_size[1], C),
                                        method="bilinear")
                out[k] = jnp.transpose(nhwc, (0, 3, 1, 2))
    return out


def resnet101_unet3plus_singleout_forward(params, x_nchw, output_size=None):
    """Matches ResNet101UNet3Plus_SingleOut.forward: returns final_pred[:, 1]."""
    out = resnet101_unet3plus_forward(params, x_nchw, output_size)
    return out["final_pred"][:, 1]


# ----------------------------------------------------------------------------- main
if __name__ == "__main__":
    num_classes = 3
    gen = ParamGen(0)
    params = {"encoder": make_resnet101_encoder_params(gen),
              "decoder": make_decoder_params(gen, num_classes)}

    key = jax.random.PRNGKey(0)
    x = jax.random.normal(key, (2, 3, 32, 32), jnp.float32)   # NCHW, like the PyTorch module

    out = resnet101_unet3plus_forward(params, x)
    out = jax.tree_util.tree_map(jax.block_until_ready, out)
    single = jax.block_until_ready(out["final_pred"][:, 1])   # module's actual return value

    assert out["cls"].shape == (2, 2)
    assert out["final_pred"].shape == (2, num_classes, 16, 16)
    assert single.shape == (2, 16, 16)
    for i in range(4):
        assert out[f"aux_head{i}"].shape == (2, num_classes, 16, 16)
    for v in jax.tree_util.tree_leaves(out):
        assert bool(jnp.all(jnp.isfinite(v)))
    assert bool(jnp.all(jnp.isfinite(single)))

    print("KERNEL_OK")
</pallas_src>

<mosaic_0001>
module attributes {stable_mosaic.version = 11 : i64} {
  func.func @_mm_bias_kernel(%arg0: i32, %arg1: i32, %arg2: i32, %arg3: memref<256x256xbf16, #tpu.memory_space<vmem>>, %arg4: memref<256x128xbf16, #tpu.memory_space<vmem>>, %arg5: memref<1x128xf32, #tpu.memory_space<vmem>>, %arg6: memref<256x128xf32, #tpu.memory_space<vmem>>) attributes {dimension_semantics = [#tpu.dimension_semantics<parallel>, #tpu.dimension_semantics<parallel>, #tpu.dimension_semantics<arbitrary>], iteration_bounds = array<i64: 2, 1, 1>, scalar_prefetch = 0 : i64, scratch_operands = 0 : i64, tpu.core_type = #tpu.core_type<tc>, window_params = [{transform_indices = @transform_0, window_bounds = array<i64: 256, 256>}, {transform_indices = @transform_1, window_bounds = array<i64: 256, 128>}, {transform_indices = @transform_2, window_bounds = array<i64: 1, 128>}, {transform_indices = @transform_3, window_bounds = array<i64: 256, 128>}]} {
    %c0_i32 = arith.constant 0 : i32
    %0 = arith.cmpi eq, %arg2, %c0_i32 : i32
    %1 = arith.extui %0 : i1 to i32
    %c0_i32_0 = arith.constant 0 : i32
    %2 = arith.cmpi ne, %1, %c0_i32_0 : i32
    scf.if %2 {
      %cst_10 = arith.constant 0.000000e+00 : f32
      %12 = vector.broadcast %cst_10 : f32 to vector<256x128xf32>
      %c0_11 = arith.constant 0 : index
      %c0_12 = arith.constant 0 : index
      %13 = vector.load %arg6[%c0_11, %c0_12] : memref<256x128xf32, #tpu.memory_space<vmem>>, vector<256x128xf32>
      tpu.vector_store %arg6[%c0_11, %c0_12], %12 {strides = array<i32>} : memref<256x128xf32, #tpu.memory_space<vmem>>, vector<256x128xf32>,
    } else {
    }
    %c0 = arith.constant 0 : index
    %c0_1 = arith.constant 0 : index
    %3 = vector.load %arg6[%c0, %c0_1] : memref<256x128xf32, #tpu.memory_space<vmem>>, vector<256x128xf32>
    %c0_2 = arith.constant 0 : index
    %c0_3 = arith.constant 0 : index
    %4 = vector.load %arg3[%c0_2, %c0_3] : memref<256x256xbf16, #tpu.memory_space<vmem>>, vector<256x256xbf16>
    %c0_4 = arith.constant 0 : index
    %c0_5 = arith.constant 0 : index
    %5 = vector.load %arg4[%c0_4, %c0_5] : memref<256x128xbf16, #tpu.memory_space<vmem>>, vector<256x128xbf16>
    %cst = arith.constant dense<0.000000e+00> : vector<256x128xf32>
    %6 = tpu.matmul %4, %5, %cst {dimension_numbers = #tpu.dot_dimension_numbers<[1], [0], [0], [1], [0, 0, 1, 1], [], []>} : vector<256x256xbf16>, vector<256x128xbf16>, vector<256x128xf32> -> vector<256x128xf32>
    %7 = arith.addf %3, %6 : vector<256x128xf32>
    %c0_6 = arith.constant 0 : index
    %c0_7 = arith.constant 0 : index
    %8 = vector.load %arg6[%c0_6, %c0_7] : memref<256x128xf32, #tpu.memory_space<vmem>>, vector<256x128xf32>
    tpu.vector_store %arg6[%c0_6, %c0_7], %7 {strides = array<i32>} : memref<256x128xf32, #tpu.memory_space<vmem>>, vector<256x128xf32>,
    %c0_i32_8 = arith.constant 0 : i32
    %9 = arith.cmpi eq, %arg2, %c0_i32_8 : i32
    %10 = arith.extui %9 : i1 to i32
    %c0_i32_9 = arith.constant 0 : i32
    %11 = arith.cmpi ne, %10, %c0_i32_9 : i32
    scf.if %11 {
      %c0_10 = arith.constant 0 : index
      %c0_11 = arith.constant 0 : index
      %12 = vector.load %arg6[%c0_10, %c0_11] : memref<256x128xf32, #tpu.memory_space<vmem>>, vector<256x128xf32>
      %c0_12 = arith.constant 0 : index
      %c0_13 = arith.constant 0 : index
      %13 = vector.load %arg5[%c0_12, %c0_13] : memref<1x128xf32, #tpu.memory_space<vmem>>, vector<1x128xf32>
      %14 = vector.broadcast %13 : vector<1x128xf32> to vector<256x128xf32>
      %15 = arith.addf %12, %14 : vector<256x128xf32>
      %cst_14 = arith.constant 0.000000e+00 : f32
      %16 = vector.broadcast %cst_14 : f32 to vector<256x128xf32>
      %17 = arith.maximumf %15, %16 : vector<256x128xf32>
      %c0_15 = arith.constant 0 : index
      %c0_16 = arith.constant 0 : index
      %18 = vector.load %arg6[%c0_15, %c0_16] : memref<256x128xf32, #tpu.memory_space<vmem>>, vector<256x128xf32>
      tpu.vector_store %arg6[%c0_15, %c0_16], %17 {strides = array<i32>} : memref<256x128xf32, #tpu.memory_space<vmem>>, vector<256x128xf32>,
    } else {
    }
    return
  }
  func.func @transform_0(%arg0: i32, %arg1: i32, %arg2: i32) -> (i32, i32) {
    %c0_i32 = arith.constant 0 : i32
    return %arg0, %arg2 : i32, i32
  }
  func.func @transform_1(%arg0: i32, %arg1: i32, %arg2: i32) -> (i32, i32) {
    %c0_i32 = arith.constant 0 : i32
    return %arg2, %arg1 : i32, i32
  }
  func.func @transform_2(%arg0: i32, %arg1: i32, %arg2: i32) -> (i32, i32) {
    %c0_i32 = arith.constant 0 : i32
    %c0_i32_0 = arith.constant 0 : i32
    return %c0_i32, %arg1 : i32, i32
  }
  func.func @transform_3(%arg0: i32, %arg1: i32, %arg2: i32) -> (i32, i32) {
    %c0_i32 = arith.constant 0 : i32
    return %arg0, %arg1 : i32, i32
  }
}

</mosaic_0001>

<llo_original>
// kernel: conv2d_fused.1
$region0: #{conv2d_fused.1}
  #allocation0 [shape = 'u32[]', space=smem, size = 0x4, offset = 0x4, fixed_abs, tag = 'smem constant byte address 0x4 - core index']
  #allocation1 [shape = 'u32[144,128]{1,0:T(1,128)}', space=vmem, size = 0x12000, scoped, tag = 'internal scratch']
  %s0 = inlined_call_operand.hbm [shape: bf16[512,256], index: 0, kind: input, shape index: {}]
  %s1 = inlined_call_operand.hbm [shape: bf16[256,128], index: 1, kind: input, shape index: {}]
  %s2 = inlined_call_operand.hbm [shape: f32[1,128], index: 2, kind: input, shape index: {}]
  %s3 = inlined_call_operand.hbm [shape: f32[512,128], index: 3, kind: output, shape index: {}]
  %s4 = sld [smem:[#allocation0]]
  $region65: #{conv2d_fused.1} parent=0
    _
  %s6 = ssub.s32 1, %s4
  %s7 = scalar_select 0, %s6, %s4
  $region1: #{conv2d_fused.1} parent=0
    #allocation2 [shape = 'u8[262144]{0}', space=vmem, size = 0x40000, scoped, tag = 'input window, operand 0']
    #allocation3 [shape = 's32[2]{0}', space=sflag, size = 0x8, scoped, tag = 'scoped memory for conv2d_fused.1']
    #allocation4 [shape = 's32[2]{0}', space=sflag, size = 0x8, scoped, tag = 'scoped memory for conv2d_fused.1']
    #allocation5 [shape = 'u8[65536]{0}', space=vmem, size = 0x10000, scoped, tag = 'input window, operand 1, single buffered']
    #allocation6 [shape = 's32[1]{0}', space=sflag, size = 0x4, scoped, tag = 'scoped memory for conv2d_fused.1']
    #allocation7 [shape = 'u8[512]{0}', space=vmem, size = 0x400, scoped, tag = 'input window, operand 2, single buffered']
    #allocation8 [shape = 'u8[262144]{0}', space=vmem, size = 0x40000, scoped, tag = 'output window, operand 0']
    %8 = vsyncpa [#allocation3], 0
    %s9 = scalar_lea.sflag [#allocation3], 1
    %10 = vsyncpa %s9, 0
    %11 = vsyncpa [#allocation6], 0
    %12 = vsyncpa [#allocation4], 0
    %s13 = scalar_lea.sflag [#allocation4], 1
    %14 = vsyncpa %s13, 0
    loop: start=0, step=1, limit=4
    $region2: #{conv2d_fused.1} parent=1 // loop_pre_header
      _
    $region3: #{conv2d_fused.1} parent=1 // loop_header
      %s16 = sphi 0, %s20
      %p17 = scmp.ge.s32.totalorder %s16, 4
      %s23 = sphi 0, %s42
      %s24 = sphi 0, %s38
      %s25 = sphi 0, %s34
      %s26 = sphi 0, %s23
      %s27 = sphi 0, %s24
      %s28 = sphi 0, %s25
      %s29 = sphi 0, %s26
      %s30 = sphi 0, %s27
      %s31 = sphi 0, %s28
      %s47 = sphi 0, %s49
      %s50 = sphi 0, %s47
      %s51 = sphi 0, %s50
      %s67 = sphi 0, %s51
      %s75 = sphi 0, %s77
      %s78 = sphi 0, %s75
      %s79 = sphi 0, %s78
      %s95 = sphi 0, %s79
      %s101 = sphi 0, %s103
      %s104 = sphi 0, %s101
      %s105 = sphi 0, %s104
      %s121 = sphi 0, %s105
      %s129 = sphi 0, %s131
      %s132 = sphi 0, %s129
      %s133 = sphi 0, %s132
      %s149 = sphi 0, %s133
    $region4: #{conv2d_fused.1} parent=1 // loop_header_branch
      %19 = sbr.rel (%p17) target = $region8
    $region5: #{conv2d_fused.1} parent=1 // loop_body
      %s21 = ssub.s32 %s16, 1
      %s22 = ssub.s32 %s16, 2
      %s32 = sadd.s32 1, %s25
      %p33 = scmp.ge.s32.totalorder %s32, 1
      %s34 = scalar_select %p33, 0, %s32
      %s35 = sadd.s32 1, %s24
      %s36 = scalar_select %p33, %s35, %s24
      %p37 = scmp.ge.s32.totalorder %s36, 1
      %s38 = scalar_select %p37, 0, %s36
      %s39 = sadd.s32 1, %s23
      %s40 = scalar_select %p37, %s39, %s23
      %p41 = scmp.ge.s32.totalorder %s40, 2
      %s42 = scalar_select %p41, 0, %s40
      %s43 = ssub.s32 %s23, %s42
      %s44 = ssub.s32 %s25, %s34
      %s45 = sor.u32 %s43, %s44
      %p46 = scmp.eq.s32.totalorder %s45, 0
      %s48 = sadd.s32 %s47, 1
      %s49 = scalar_select %p46, %s47, %s48
      %p52 = pneg %p46
      %p53 = scmp.eq.s32.totalorder %s16, 1
      %p54 = por %p52, %p53
      %p55 = scmp.ne.s32.totalorder %s47, %s50
      %p56 = scmp.eq.s32.totalorder %s16, 0
      %p57 = por %p55, %p56
      %p58 = scmp.ne.s32.totalorder %s47, %s50
      %p59 = scmp.eq.s32.totalorder %s21, 1
      %p60 = por %p58, %p59
      %p61 = scmp.ne.s32.totalorder %s50, %s51
      %p62 = scmp.eq.s32.totalorder %s21, 0
      %p63 = por %p61, %p62
      %p64 = scmp.ne.s32.totalorder %s50, %s51
      %p65 = scmp.eq.s32.totalorder %s22, 1
      %p66 = por %p64, %p65
      %p68 = scmp.ne.s32.totalorder %s51, %s67
      %p69 = scmp.eq.s32.totalorder %s22, 0
      %p70 = por %p68, %p69
      %s71 = ssub.s32 %s25, %s34
      %s72 = ssub.s32 %s24, %s38
      %s73 = sor.u32 %s71, %s72
      %p74 = scmp.eq.s32.totalorder %s73, 0
      %s76 = sadd.s32 %s75, 1
      %s77 = scalar_select %p74, %s75, %s76
      %p80 = pneg %p74
      %p81 = scmp.eq.s32.totalorder %s16, 1
      %p82 = por %p80, %p81
      %p83 = scmp.ne.s32.totalorder %s75, %s78
      %p84 = scmp.eq.s32.totalorder %s16, 0
      %p85 = por %p83, %p84
      %p86 = scmp.ne.s32.totalorder %s75, %s78
      %p87 = scmp.eq.s32.totalorder %s21, 1
      %p88 = por %p86, %p87
      %p89 = scmp.ne.s32.totalorder %s78, %s79
      %p90 = scmp.eq.s32.totalorder %s21, 0
      %p91 = por %p89, %p90
      %p92 = scmp.ne.s32.totalorder %s78, %s79
      %p93 = scmp.eq.s32.totalorder %s22, 1
      %p94 = por %p92, %p93
      %p96 = scmp.ne.s32.totalorder %s79, %s95
      %p97 = scmp.eq.s32.totalorder %s22, 0
      %p98 = por %p96, %p97
      %s99 = ssub.s32 %s24, %s38
      %p100 = scmp.eq.s32.totalorder %s99, 0
      %s102 = sadd.s32 %s101, 1
      %s103 = scalar_select %p100, %s101, %s102
      %p106 = pneg %p100
      %p107 = scmp.eq.s32.totalorder %s16, 1
      %p108 = por %p106, %p107
      %p109 = scmp.ne.s32.totalorder %s101, %s104
      %p110 = scmp.eq.s32.totalorder %s16, 0
      %p111 = por %p109, %p110
      %p112 = scmp.ne.s32.totalorder %s101, %s104
      %p113 = scmp.eq.s32.totalorder %s21, 1
      %p114 = por %p112, %p113
      %p115 = scmp.ne.s32.totalorder %s104, %s105
      %p116 = scmp.eq.s32.totalorder %s21, 0
      %p117 = por %p115, %p116
      %p118 = scmp.ne.s32.totalorder %s104, %s105
      %p119 = scmp.eq.s32.totalorder %s22, 1
      %p120 = por %p118, %p119
      %p122 = scmp.ne.s32.totalorder %s105, %s121
      %p123 = scmp.eq.s32.totalorder %s22, 0
      %p124 = por %p122, %p123
      %s125 = ssub.s32 %s23, %s42
      %s126 = ssub.s32 %s24, %s38
      %s127 = sor.u32 %s125, %s126
      %p128 = scmp.eq.s32.totalorder %s127, 0
      %s130 = sadd.s32 %s129, 1
      %s131 = scalar_select %p128, %s129, %s130
      %p134 = pneg %p128
      %p135 = scmp.eq.s32.totalorder %s16, 1
      %p136 = por %p134, %p135
      %p137 = scmp.ne.s32.totalorder %s129, %s132
      %p138 = scmp.eq.s32.totalorder %s16, 0
      %p139 = por %p137, %p138
      %p140 = scmp.ne.s32.totalorder %s129, %s132
      %p141 = scmp.eq.s32.totalorder %s21, 1
      %p142 = por %p140, %p141
      %p143 = scmp.ne.s32.totalorder %s132, %s133
      %p144 = scmp.eq.s32.totalorder %s21, 0
      %p145 = por %p143, %p144
      %p146 = scmp.ne.s32.totalorder %s132, %s133
      %p147 = scmp.eq.s32.totalorder %s22, 1
      %p148 = por %p146, %p147
      %p150 = scmp.ne.s32.totalorder %s133, %s149
      %p151 = scmp.eq.s32.totalorder %s22, 0
      %p152 = por %p150, %p151
      %p153 = scmp.le.s32.totalorder 1, %s16
      %p154 = scmp.lt.s32.totalorder %s16, 3
      %p155 = pnand %p153, %p154
      %p156 = pneg %p155
      // Predicated region
      $region9: #{conv2d_fused.1} parent=5 // pred_check
        _
      $region10: #{conv2d_fused.1} parent=5 // pred_check_branch
        %158 = sbr.rel (%p155) target = $region12
      $region11: #{conv2d_fused.1} parent=5 // pred_region
        %s159 = ssub.s32 %s16, 1
        // Predicated region
        $region13: #{conv2d_fused.1} parent=11 // pred_check
          %p160 = pneg %p91
        $region14: #{conv2d_fused.1} parent=11 // pred_check_branch
          %162 = sbr.rel (%p160) target = $region16
        $region15: #{conv2d_fused.1} parent=11 // pred_region
          %s163 = smul.u32 32, %s28
          %s165 = ssub.s32 2048, 2048
          %166 = vsyncadd [#allocation6], %s165
          %s167 = sadd.s32 %s27, %s163
          %s168 = smul.addr %s167, 64
          %s169 = scalar_lea.hbm %s1, %s168
          %s170 = sshll.u32 [#allocation5], 4
          %s171 = int_to_ptr.vmem [resolvable:$true] %s170
          %176 = dma.hbm_to_vmem [thread:$0]  %s169, 2048, %s171, [#allocation6], 64, 64, 4
        $region16: #{conv2d_fused.1} parent=11 // pred_fallthru
          _
        // Predicated region
        $region17: #{conv2d_fused.1} parent=11 // pred_check
          %p177 = pneg %p117
        $region18: #{conv2d_fused.1} parent=11 // pred_check_branch
          %179 = sbr.rel (%p177) target = $region20
        $region19: #{conv2d_fused.1} parent=11 // pred_region
          %s181 = ssub.s32 16, 16
          %182 = vsyncadd [#allocation6], %s181
          %s183 = smul.addr %s27, 16
          %s184 = scalar_lea.hbm %s2, %s183
          %s186 = sshll.u32 [#allocation7], 4
          %s187 = int_to_ptr.vmem [resolvable:$true] %s186
          %189 = dma.hbm_to_vmem [thread:$0]  %s184, 16, %s187, [#allocation6]
        $region20: #{conv2d_fused.1} parent=11 // pred_fallthru
          _
      $region12: #{conv2d_fused.1} parent=5 // pred_fallthru
        _
      %p190 = scmp.lt.s32.totalorder %s16, 2
      // Predicated region
      $region21: #{conv2d_fused.1} parent=5 // pred_check
        %p191 = pneg %p190
      $region22: #{conv2d_fused.1} parent=5 // pred_check_branch
        %193 = sbr.rel (%p191) target = $region24
      $region23: #{conv2d_fused.1} parent=5 // pred_region
        // Predicated region
        $region25: #{conv2d_fused.1} parent=23 // pred_check
          %p194 = pneg %p57
        $region26: #{conv2d_fused.1} parent=23 // pred_check_branch
          %196 = sbr.rel (%p194) target = $region28
        $region27: #{conv2d_fused.1} parent=23 // pred_region
          %s197 = sand.u32 %s47, 1
          %s198 = scalar_lea.sflag [#allocation3], %s197
          %s199 = sand.u32 %s47, 1
          %s200 = smul.addr %s199, 256
          %s201 = scalar_lea.vmem [#allocation2], %s200
          %s202 = smul.u32 32, %s23
          %s203 = smul.u32 2, %s25
          %s205 = ssub.s32 4096, 4096
          %206 = vsyncadd %s198, %s205
          %s207 = smul.addr %s202, 2
          %s208 = sadd.s32 %s203, %s207
          %s209 = smul.addr %s208, 64
          %s210 = scalar_lea.hbm %s0, %s209
          %s211 = sshll.u32 %s201, 4
          %s212 = int_to_ptr.vmem [resolvable:$true] %s211
          %217 = dma.hbm_to_vmem [thread:$0]  %s210, 4096, %s212, %s198, 128, 128, 8
        $region28: #{conv2d_fused.1} parent=23 // pred_fallthru
          _
      $region24: #{conv2d_fused.1} parent=5 // pred_fallthru
        _
      %p218 = scmp.le.s32.totalorder 1, %s16
      %p219 = scmp.lt.s32.totalorder %s16, 3
      %p220 = pnand %p218, %p219
      %p221 = pneg %p220
      // Predicated region
      $region29: #{conv2d_fused.1} parent=5 // pred_check
        _
      $region30: #{conv2d_fused.1} parent=5 // pred_check_branch
        %223 = sbr.rel (%p220) target = $region32
      $region31: #{conv2d_fused.1} parent=5 // pred_region
        %s224 = ssub.s32 %s16, 1
        %s225 = sand.u32 %s50, 1
        %s226 = scalar_lea.sflag [#allocation3], %s225
        %s227 = sand.u32 %s50, 1
        %s228 = smul.addr %s227, 256
        %s229 = scalar_lea.vmem [#allocation2], %s228
        // Predicated region
        $region33: #{conv2d_fused.1} parent=31 // pred_check
          %p230 = pneg %p63
        $region34: #{conv2d_fused.1} parent=31 // pred_check_branch
          %232 = sbr.rel (%p230) target = $region36
        $region35: #{conv2d_fused.1} parent=31 // pred_region
          %233 = dma.done %s226, 4096
        $region36: #{conv2d_fused.1} parent=31 // pred_fallthru
          _
        // Predicated region
        $region37: #{conv2d_fused.1} parent=31 // pred_check
          %p234 = pneg %p91
        $region38: #{conv2d_fused.1} parent=31 // pred_check_branch
          %236 = sbr.rel (%p234) target = $region40
        $region39: #{conv2d_fused.1} parent=31 // pred_region
          %237 = dma.done [#allocation6], 2048
        $region40: #{conv2d_fused.1} parent=31 // pred_fallthru
          _
        // Predicated region
        $region41: #{conv2d_fused.1} parent=31 // pred_check
          %p238 = pneg %p117
        $region42: #{conv2d_fused.1} parent=31 // pred_check_branch
          %240 = sbr.rel (%p238) target = $region44
        $region43: #{conv2d_fused.1} parent=31 // pred_region
          %241 = dma.done [#allocation6], 16
        $region44: #{conv2d_fused.1} parent=31 // pred_fallthru
          _
        %s242 = sand.u32 %s50, 1
        %s243 = scalar_lea.sflag [#allocation3], %s242
        %s244 = sand.u32 %s50, 1
        %s245 = smul.addr %s244, 256
        %s246 = scalar_lea.vmem [#allocation2], %s245
        %p247 = pneg %p63
        %p248 = pneg %p60
        %p249 = pneg %p91
        %p250 = pneg %p88
        %p251 = pneg %p117
        %p252 = pneg %p114
        %p253 = pneg %p145
        %p254 = pneg %p142
        %s255 = sand.u32 %s132, 1
        %s256 = scalar_lea.sflag [#allocation4], %s255
        %s257 = sand.u32 %s132, 1
        %s258 = smul.addr %s257, 256
        %s259 = scalar_lea.vmem [#allocation8], %s258
        %s260 = smul.u32 32, %s26
        %s261 = smul.u32 2, %s28
        %s262 = smul.u32 32, %s28
        %s263 = smul.u32 32, %s26
        %p265 = scmp.eq.s32.totalorder %s28, 0
        // Predicated region
        $region45: #{conv2d_fused.1} parent=31 // pred_check
          %p266 = pneg %p265
        $region46: #{conv2d_fused.1} parent=31 // pred_check_branch
          %268 = sbr.rel (%p266) target = $region48
        $region47: #{conv2d_fused.1} parent=31 // pred_region
          %269 = vst [vmem:[%s259] sm:$0xff] 0.0
          %270 = vst [vmem:[%s259 + $0x8] sm:$0xff] 0.0
          %271 = vst [vmem:[%s259 + $0x10] sm:$0xff] 0.0
          %272 = vst [vmem:[%s259 + $0x18] sm:$0xff] 0.0
          %273 = vst [vmem:[%s259 + $0x20] sm:$0xff] 0.0
          %274 = vst [vmem:[%s259 + $0x28] sm:$0xff] 0.0
          %275 = vst [vmem:[%s259 + $0x30] sm:$0xff] 0.0
          %276 = vst [vmem:[%s259 + $0x38] sm:$0xff] 0.0
          %277 = vst [vmem:[%s259 + $0x40] sm:$0xff] 0.0
          %278 = vst [vmem:[%s259 + $0x48] sm:$0xff] 0.0
          %279 = vst [vmem:[%s259 + $0x50] sm:$0xff] 0.0
          %280 = vst [vmem:[%s259 + $0x58] sm:$0xff] 0.0
          %281 = vst [vmem:[%s259 + $0x60] sm:$0xff] 0.0
          %282 = vst [vmem:[%s259 + $0x68] sm:$0xff] 0.0
          %283 = vst [vmem:[%s259 + $0x70] sm:$0xff] 0.0
          %284 = vst [vmem:[%s259 + $0x78] sm:$0xff] 0.0
          %285 = vst [vmem:[%s259 + $0x80] sm:$0xff] 0.0
          %286 = vst [vmem:[%s259 + $0x88] sm:$0xff] 0.0
          %287 = vst [vmem:[%s259 + $0x90] sm:$0xff] 0.0
          %288 = vst [vmem:[%s259 + $0x98] sm:$0xff] 0.0
          %289 = vst [vmem:[%s259 + $0xa0] sm:$0xff] 0.0
          %290 = vst [vmem:[%s259 + $0xa8] sm:$0xff] 0.0
          %291 = vst [vmem:[%s259 + $0xb0] sm:$0xff] 0.0
          %292 = vst [vmem:[%s259 + $0xb8] sm:$0xff] 0.0
          %293 = vst [vmem:[%s259 + $0xc0] sm:$0xff] 0.0
          %294 = vst [vmem:[%s259 + $0xc8] sm:$0xff] 0.0
          %295 = vst [vmem:[%s259 + $0xd0] sm:$0xff] 0.0
          %296 = vst [vmem:[%s259 + $0xd8] sm:$0xff] 0.0
          %297 = vst [vmem:[%s259 + $0xe0] sm:$0xff] 0.0
          %298 = vst [vmem:[%s259 + $0xe8] sm:$0xff] 0.0
          %299 = vst [vmem:[%s259 + $0xf0] sm:$0xff] 0.0
          %300 = vst [vmem:[%s259 + $0xf8] sm:$0xff] 0.0
        $region48: #{conv2d_fused.1} parent=31 // pred_fallthru
          _
        %v301 = vld [vmem:[%s259] sm:$0xff]
        %v302 = vld [vmem:[%s259 + $0x8] sm:$0xff]
        %v303 = vld [vmem:[%s259 + $0x10] sm:$0xff]
        %v304 = vld [vmem:[%s259 + $0x18] sm:$0xff]
        %v305 = vld [vmem:[%s259 + $0x20] sm:$0xff]
        %v306 = vld [vmem:[%s259 + $0x28] sm:$0xff]
        %v307 = vld [vmem:[%s259 + $0x30] sm:$0xff]
        %v308 = vld [vmem:[%s259 + $0x38] sm:$0xff]
        %v309 = vld [vmem:[%s259 + $0x40] sm:$0xff]
        %v310 = vld [vmem:[%s259 + $0x48] sm:$0xff]
        %v311 = vld [vmem:[%s259 + $0x50] sm:$0xff]
        %v312 = vld [vmem:[%s259 + $0x58] sm:$0xff]
        %v313 = vld [vmem:[%s259 + $0x60] sm:$0xff]
        %v314 = vld [vmem:[%s259 + $0x68] sm:$0xff]
        %v315 = vld [vmem:[%s259 + $0x70] sm:$0xff]
        %v316 = vld [vmem:[%s259 + $0x78] sm:$0xff]
        %v317 = vld [vmem:[%s259 + $0x80] sm:$0xff]
        %v318 = vld [vmem:[%s259 + $0x88] sm:$0xff]
        %v319 = vld [vmem:[%s259 + $0x90] sm:$0xff]
        %v320 = vld [vmem:[%s259 + $0x98] sm:$0xff]
        %v321 = vld [vmem:[%s259 + $0xa0] sm:$0xff]
        %v322 = vld [vmem:[%s259 + $0xa8] sm:$0xff]
        %v323 = vld [vmem:[%s259 + $0xb0] sm:$0xff]
        %v324 = vld [vmem:[%s259 + $0xb8] sm:$0xff]
        %v325 = vld [vmem:[%s259 + $0xc0] sm:$0xff]
        %v326 = vld [vmem:[%s259 + $0xc8] sm:$0xff]
        %v327 = vld [vmem:[%s259 + $0xd0] sm:$0xff]
        %v328 = vld [vmem:[%s259 + $0xd8] sm:$0xff]
        %v329 = vld [vmem:[%s259 + $0xe0] sm:$0xff]
        %v330 = vld [vmem:[%s259 + $0xe8] sm:$0xff]
        %v331 = vld [vmem:[%s259 + $0xf0] sm:$0xff]
        %v332 = vld [vmem:[%s259 + $0xf8] sm:$0xff]
        %v333 = vld [vmem:[%s229] sm:$0xff]
        %v334 = vld [vmem:[%s229 + $0x8] sm:$0xff]
        %v335 = vld [vmem:[%s229 + $0x10] sm:$0xff]
        %v336 = vld [vmem:[%s229 + $0x18] sm:$0xff]
        %v337 = vld [vmem:[%s229 + $0x20] sm:$0xff]
        %v338 = vld [vmem:[%s229 + $0x28] sm:$0xff]
        %v339 = vld [vmem:[%s229 + $0x30] sm:$0xff]
        %v340 = vld [vmem:[%s229 + $0x38] sm:$0xff]
        %v341 = vld [vmem:[%s229 + $0x40] sm:$0xff]
        %v342 = vld [vmem:[%s229 + $0x48] sm:$0xff]
        %v343 = vld [vmem:[%s229 + $0x50] sm:$0xff]
        %v344 = vld [vmem:[%s229 + $0x58] sm:$0xff]
        %v345 = vld [vmem:[%s229 + $0x60] sm:$0xff]
        %v346 = vld [vmem:[%s229 + $0x68] sm:$0xff]
        %v347 = vld [vmem:[%s229 + $0x70] sm:$0xff]
        %v348 = vld [vmem:[%s229 + $0x78] sm:$0xff]
        %v349 = vld [vmem:[%s229 + $0x80] sm:$0xff]
        %v350 = vld [vmem:[%s229 + $0x88] sm:$0xff]
        %v351 = vld [vmem:[%s229 + $0x90] sm:$0xff]
        %v352 = vld [vmem:[%s229 + $0x98] sm:$0xff]
        %v353 = vld [vmem:[%s229 + $0xa0] sm:$0xff]
        %v354 = vld [vmem:[%s229 + $0xa8] sm:$0xff]
        %v355 = vld [vmem:[%s229 + $0xb0] sm:$0xff]
        %v356 = vld [vmem:[%s229 + $0xb8] sm:$0xff]
        %v357 = vld [vmem:[%s229 + $0xc0] sm:$0xff]
        %v358 = vld [vmem:[%s229 + $0xc8] sm:$0xff]
        %v359 = vld [vmem:[%s229 + $0xd0] sm:$0xff]
        %v360 = vld [vmem:[%s229 + $0xd8] sm:$0xff]
        %v361 = vld [vmem:[%s229 + $0xe0] sm:$0xff]
        %v362 = vld [vmem:[%s229 + $0xe8] sm:$0xff]
        %v363 = vld [vmem:[%s229 + $0xf0] sm:$0xff]
        %v364 = vld [vmem:[%s229 + $0xf8] sm:$0xff]
        %v365 = vld [vmem:[#allocation5] sm:$0xf]
        %v366 = vld [vmem:[#allocation5 + $0x4] sm:$0xf]
        %v367 = vld [vmem:[#allocation5 + $0x8] sm:$0xf]
        %v368 = vld [vmem:[#allocation5 + $0xc] sm:$0xf]
        %v369 = vld [vmem:[#allocation5 + $0x10] sm:$0xf]
        %v370 = vld [vmem:[#allocation5 + $0x14] sm:$0xf]
        %v371 = vld [vmem:[#allocation5 + $0x18] sm:$0xf]
        %v372 = vld [vmem:[#allocation5 + $0x1c] sm:$0xf]
        %v373 = vld [vmem:[#allocation5 + $0x20] sm:$0xf]
        %v374 = vld [vmem:[#allocation5 + $0x24] sm:$0xf]
        %v375 = vld [vmem:[#allocation5 + $0x28] sm:$0xf]
        %v376 = vld [vmem:[#allocation5 + $0x2c] sm:$0xf]
        %v377 = vld [vmem:[#allocation5 + $0x30] sm:$0xf]
        %v378 = vld [vmem:[#allocation5 + $0x34] sm:$0xf]
        %v379 = vld [vmem:[#allocation5 + $0x38] sm:$0xf]
        %v380 = vld [vmem:[#allocation5 + $0x3c] sm:$0xf]
        %v381 = vld [vmem:[#allocation5 + $0x40] sm:$0xf]
        %v382 = vld [vmem:[#allocation5 + $0x44] sm:$0xf]
        %v383 = vld [vmem:[#allocation5 + $0x48] sm:$0xf]
        %v384 = vld [vmem:[#allocation5 + $0x4c] sm:$0xf]
        %v385 = vld [vmem:[#allocation5 + $0x50] sm:$0xf]
        %v386 = vld [vmem:[#allocation5 + $0x54] sm:$0xf]
        %v387 = vld [vmem:[#allocation5 + $0x58] sm:$0xf]
        %v388 = vld [vmem:[#allocation5 + $0x5c] sm:$0xf]
        %v389 = vld [vmem:[#allocation5 + $0x60] sm:$0xf]
        %v390 = vld [vmem:[#allocation5 + $0x64] sm:$0xf]
        %v391 = vld [vmem:[#allocation5 + $0x68] sm:$0xf]
        %v392 = vld [vmem:[#allocation5 + $0x6c] sm:$0xf]
        %v393 = vld [vmem:[#allocation5 + $0x70] sm:$0xf]
        %v394 = vld [vmem:[#allocation5 + $0x74] sm:$0xf]
        %v395 = vld [vmem:[#allocation5 + $0x78] sm:$0xf]
        %v396 = vld [vmem:[#allocation5 + $0x7c] sm:$0xf]
        %v429 = vunpack.c.l.b16 %v333
        %v430 = vunpack.c.h.b16 %v333
        %v431 = vunpack.c.l.b16 %v334
        %v432 = vunpack.c.h.b16 %v334
        %v433 = vunpack.c.l.b16 %v335
        %v434 = vunpack.c.h.b16 %v335
        %v435 = vunpack.c.l.b16 %v336
        %v436 = vunpack.c.h.b16 %v336
        %v437 = vunpack.c.l.b16 %v337
        %v438 = vunpack.c.h.b16 %v337
        %v439 = vunpack.c.l.b16 %v338
        %v440 = vunpack.c.h.b16 %v338
        %v441 = vunpack.c.l.b16 %v339
        %v442 = vunpack.c.h.b16 %v339
        %v443 = vunpack.c.l.b16 %v340
        %v444 = vunpack.c.h.b16 %v340
        %v445 = vunpack.c.l.b16 %v341
        %v446 = vunpack.c.h.b16 %v341
        %v447 = vunpack.c.l.b16 %v342
        %v448 = vunpack.c.h.b16 %v342
        %v449 = vunpack.c.l.b16 %v343
        %v450 = vunpack.c.h.b16 %v343
        %v451 = vunpack.c.l.b16 %v344
        %v452 = vunpack.c.h.b16 %v344
        %v453 = vunpack.c.l.b16 %v345
        %v454 = vunpack.c.h.b16 %v345
        %v455 = vunpack.c.l.b16 %v346
        %v456 = vunpack.c.h.b16 %v346
        %v457 = vunpack.c.l.b16 %v347
        %v458 = vunpack.c.h.b16 %v347
        %v459 = vunpack.c.l.b16 %v348
        %v460 = vunpack.c.h.b16 %v348
        %v461 = vunpack.c.l.b16 %v349
        %v462 = vunpack.c.h.b16 %v349
        %v463 = vunpack.c.l.b16 %v350
        %v464 = vunpack.c.h.b16 %v350
        %v465 = vunpack.c.l.b16 %v351
        %v466 = vunpack.c.h.b16 %v351
        %v467 = vunpack.c.l.b16 %v352
        %v468 = vunpack.c.h.b16 %v352
        %v469 = vunpack.c.l.b16 %v353
        %v470 = vunpack.c.h.b16 %v353
        %v471 = vunpack.c.l.b16 %v354
        %v472 = vunpack.c.h.b16 %v354
        %v473 = vunpack.c.l.b16 %v355
        %v474 = vunpack.c.h.b16 %v355
        %v475 = vunpack.c.l.b16 %v356
        %v476 = vunpack.c.h.b16 %v356
        %v477 = vunpack.c.l.b16 %v357
        %v478 = vunpack.c.h.b16 %v357
        %v479 = vunpack.c.l.b16 %v358
        %v480 = vunpack.c.h.b16 %v358
        %v481 = vunpack.c.l.b16 %v359
        %v482 = vunpack.c.h.b16 %v359
        %v483 = vunpack.c.l.b16 %v360
        %v484 = vunpack.c.h.b16 %v360
        %v485 = vunpack.c.l.b16 %v361
        %v486 = vunpack.c.h.b16 %v361
        %v487 = vunpack.c.l.b16 %v362
        %v488 = vunpack.c.h.b16 %v362
        %v489 = vunpack.c.l.b16 %v363
        %v490 = vunpack.c.h.b16 %v363
        %v491 = vunpack.c.l.b16 %v364
        %v492 = vunpack.c.h.b16 %v364
        %v493 = vpack.c.b16 %v431, %v429
        %v494 = vpack.c.b16 %v432, %v430
        %v495 = vpack.c.b16 %v435, %v433
        %v496 = vpack.c.b16 %v436, %v434
        %v497 = vpack.c.b16 %v439, %v437
        %v498 = vpack.c.b16 %v440, %v438
        %v499 = vpack.c.b16 %v443, %v441
        %v500 = vpack.c.b16 %v444, %v442
        %v501 = vpack.c.b16 %v447, %v445
        %v502 = vpack.c.b16 %v448, %v446
        %v503 = vpack.c.b16 %v451, %v449
        %v504 = vpack.c.b16 %v452, %v450
        %v505 = vpack.c.b16 %v455, %v453
        %v506 = vpack.c.b16 %v456, %v454
        %v507 = vpack.c.b16 %v459, %v457
        %v508 = vpack.c.b16 %v460, %v458
        %v509 = vpack.c.b16 %v463, %v461
        %v510 = vpack.c.b16 %v464, %v462
        %v511 = vpack.c.b16 %v467, %v465
        %v512 = vpack.c.b16 %v468, %v466
        %v513 = vpack.c.b16 %v471, %v469
        %v514 = vpack.c.b16 %v472, %v470
        %v515 = vpack.c.b16 %v475, %v473
        %v516 = vpack.c.b16 %v476, %v474
        %v517 = vpack.c.b16 %v479, %v477
        %v518 = vpack.c.b16 %v480, %v478
        %v519 = vpack.c.b16 %v483, %v481
        %v520 = vpack.c.b16 %v484, %v482
        %v521 = vpack.c.b16 %v487, %v485
        %v522 = vpack.c.b16 %v488, %v486
        %v523 = vpack.c.b16 %v491, %v489
        %v524 = vpack.c.b16 %v492, %v490
        %v589 = vunpack.c.l.b16 %v365
        %v590 = vunpack.c.l.b16 %v366
        %v591 = vunpack.c.l.b16 %v367
        %v592 = vunpack.c.l.b16 %v368
        %v593 = vunpack.c.l.b16 %v369
        %v594 = vunpack.c.l.b16 %v370
        %v595 = vunpack.c.l.b16 %v371
        %v596 = vunpack.c.l.b16 %v372
        %v597 = vunpack.c.l.b16 %v373
        %v598 = vunpack.c.l.b16 %v374
        %v599 = vunpack.c.l.b16 %v375
        %v600 = vunpack.c.l.b16 %v376
        %v601 = vunpack.c.l.b16 %v377
        %v602 = vunpack.c.l.b16 %v378
        %v603 = vunpack.c.l.b16 %v379
        %v604 = vunpack.c.l.b16 %v380
        %v605 = vunpack.c.l.b16 %v381
        %v606 = vunpack.c.l.b16 %v382
        %v607 = vunpack.c.l.b16 %v383
        %v608 = vunpack.c.l.b16 %v384
        %v609 = vunpack.c.l.b16 %v385
        %v610 = vunpack.c.l.b16 %v386
        %v611 = vunpack.c.l.b16 %v387
        %v612 = vunpack.c.l.b16 %v388
        %v613 = vunpack.c.l.b16 %v389
        %v614 = vunpack.c.l.b16 %v390
        %v615 = vunpack.c.l.b16 %v391
        %v616 = vunpack.c.l.b16 %v392
        %v617 = vunpack.c.l.b16 %v393
        %v618 = vunpack.c.l.b16 %v394
        %v619 = vunpack.c.l.b16 %v395
        %v620 = vunpack.c.l.b16 %v396
        %v621 = vpack.c.b16 %v590, %v589
        %v622 = vpack.c.b16 %v592, %v591
        %v623 = vpack.c.b16 %v594, %v593
        %v624 = vpack.c.b16 %v596, %v595
        %v625 = vpack.c.b16 %v598, %v597
        %v626 = vpack.c.b16 %v600, %v599
        %v627 = vpack.c.b16 %v602, %v601
        %v628 = vpack.c.b16 %v604, %v603
        %v629 = vpack.c.b16 %v606, %v605
        %v630 = vpack.c.b16 %v608, %v607
        %v631 = vpack.c.b16 %v610, %v609
        %v632 = vpack.c.b16 %v612, %v611
        %v633 = vpack.c.b16 %v614, %v613
        %v634 = vpack.c.b16 %v616, %v615
        %v635 = vpack.c.b16 %v618, %v617
        %v636 = vpack.c.b16 %v620, %v619
        %653 = vmatprep.subr.bf16.mxu0 0
        %654 = vmatpush1.bf16.msra.mxu0 %v621
        %655 = vmatprep.subr.bf16.mxu0 0
        %656 = vmatpush1.bf16.msra.mxu0 %v622
        %657 = vmatprep.subr.bf16.mxu0 0
        %658 = vmatpush1.bf16.msra.mxu0 %v623
        %659 = vmatprep.subr.bf16.mxu0 0
        %660 = vmatpush1.bf16.msra.mxu0 %v624
        %661 = vmatprep.subr.bf16.mxu0 0
        %662 = vmatpush1.bf16.msra.mxu0 %v625
        %663 = vmatprep.subr.bf16.mxu0 0
        %664 = vmatpush1.bf16.msra.mxu0 %v626
        %665 = vmatprep.subr.bf16.mxu0 0
        %666 = vmatpush1.bf16.msra.mxu0 %v627
        %667 = vmatprep.subr.bf16.mxu0 0
        %668 = vmatpush1.bf16.msra.mxu0 %v628
        %669 = vmatprep.subr.bf16.mxu0 0
        %670 = vmatpush1.bf16.msra.mxu0 %v629
        %671 = vmatprep.subr.bf16.mxu0 0
        %672 = vmatpush1.bf16.msra.mxu0 %v630
        %673 = vmatprep.subr.bf16.mxu0 0
        %674 = vmatpush1.bf16.msra.mxu0 %v631
        %675 = vmatprep.subr.bf16.mxu0 0
        %676 = vmatpush1.bf16.msra.mxu0 %v632
        %677 = vmatprep.subr.bf16.mxu0 0
        %678 = vmatpush1.bf16.msra.mxu0 %v633
        %679 = vmatprep.subr.bf16.mxu0 0
        %680 = vmatpush1.bf16.msra.mxu0 %v634
        %681 = vmatprep.subr.bf16.mxu0 0
        %682 = vmatpush1.bf16.msra.mxu0 %v635
        %683 = vmatprep.subr.bf16.mxu0 0
        %684 = vmatpush1.bf16.msra.mxu0 %v636
        %685 = vmatprep.mubr.bf16.mxu0 %v494
        %686 = vmatmul.mubr.bf16.gmra.mrb[0].mxu0 %v493
        %v687 = vpop.f32.mrb[0].mxu0
        %v688 = vadd.f32 0.0, %v687
        %v689 = vpop.f32.mrb[0].mxu0
        %v690 = vpop.f32.mrb[0].mxu0
        %v691 = vadd.f32 0.0, %v690
        %v692 = vpop.f32.mrb[0].mxu0
        %693 = vmatprep.mubr.bf16.mxu0 %v496
        %694 = vmatmul.mubr.bf16.gmra.mrb[0].mxu0 %v495
        %v695 = vpop.f32.mrb[0].mxu0
        %v696 = vadd.f32 0.0, %v695
        %v697 = vpop.f32.mrb[0].mxu0
        %v698 = vpop.f32.mrb[0].mxu0
        %v699 = vadd.f32 0.0, %v698
        %v700 = vpop.f32.mrb[0].mxu0
        %701 = vmatprep.mubr.bf16.mxu0 %v498
        %702 = vmatmul.mubr.bf16.gmra.mrb[0].mxu0 %v497
        %v703 = vpop.f32.mrb[0].mxu0
        %v704 = vadd.f32 0.0, %v703
        %v705 = vpop.f32.mrb[0].mxu0
        %v706 = vpop.f32.mrb[0].mxu0
        %v707 = vadd.f32 0.0, %v706
        %v708 = vpop.f32.mrb[0].mxu0
        %709 = vmatprep.mubr.bf16.mxu0 %v500
        %710 = vmatmul.mubr.bf16.gmra.mrb[0].mxu0 %v499
        %v711 = vpop.f32.mrb[0].mxu0
        %v712 = vadd.f32 0.0, %v711
        %v713 = vpop.f32.mrb[0].mxu0
        %v714 = vpop.f32.mrb[0].mxu0
        %v715 = vadd.f32 0.0, %v714
        %v716 = vpop.f32.mrb[0].mxu0
        %717 = vmatprep.mubr.bf16.mxu0 %v502
        %718 = vmatmul.mubr.bf16.gmra.mrb[0].mxu0 %v501
        %v719 = vpop.f32.mrb[0].mxu0
        %v720 = vadd.f32 0.0, %v719
        %v721 = vpop.f32.mrb[0].mxu0
        %v722 = vpop.f32.mrb[0].mxu0
        %v723 = vadd.f32 0.0, %v722
        %v724 = vpop.f32.mrb[0].mxu0
        %725 = vmatprep.mubr.bf16.mxu0 %v504
        %726 = vmatmul.mubr.bf16.gmra.mrb[0].mxu0 %v503
        %v727 = vpop.f32.mrb[0].mxu0
        %v728 = vadd.f32 0.0, %v727
        %v729 = vpop.f32.mrb[0].mxu0
        %v730 = vpop.f32.mrb[0].mxu0
        %v731 = vadd.f32 0.0, %v730
        %v732 = vpop.f32.mrb[0].mxu0
        %733 = vmatprep.mubr.bf16.mxu0 %v506
        %734 = vmatmul.mubr.bf16.gmra.mrb[0].mxu0 %v505
        %v735 = vpop.f32.mrb[0].mxu0
        %v736 = vadd.f32 0.0, %v735
        %v737 = vpop.f32.mrb[0].mxu0
        %v738 = vpop.f32.mrb[0].mxu0
        %v739 = vadd.f32 0.0, %v738
        %v740 = vpop.f32.mrb[0].mxu0
        %741 = vmatprep.mubr.bf16.mxu0 %v508
        %742 = vmatmul.mubr.bf16.gmra.mrb[0].mxu0 %v507
        %v743 = vpop.f32.mrb[0].mxu0
        %v744 = vadd.f32 0.0, %v743
        %v745 = vpop.f32.mrb[0].mxu0
        %v746 = vpop.f32.mrb[0].mxu0
        %v747 = vadd.f32 0.0, %v746
        %v748 = vpop.f32.mrb[0].mxu0
        %749 = vmatprep.mubr.bf16.mxu0 %v510
        %750 = vmatmul.mubr.bf16.gmra.mrb[0].mxu0 %v509
        %v751 = vpop.f32.mrb[0].mxu0
        %v752 = vadd.f32 0.0, %v751
        %v753 = vpop.f32.mrb[0].mxu0
        %v754 = vpop.f32.mrb[0].mxu0
        %v755 = vadd.f32 0.0, %v754
        %v756 = vpop.f32.mrb[0].mxu0
        %757 = vmatprep.mubr.bf16.mxu0 %v512
        %758 = vmatmul.mubr.bf16.gmra.mrb[0].mxu0 %v511
        %v759 = vpop.f32.mrb[0].mxu0
        %v760 = vadd.f32 0.0, %v759
        %v761 = vpop.f32.mrb[0].mxu0
        %v762 = vpop.f32.mrb[0].mxu0
        %v763 = vadd.f32 0.0, %v762
        %v764 = vpop.f32.mrb[0].mxu0
        %765 = vmatprep.mubr.bf16.mxu0 %v514
        %766 = vmatmul.mubr.bf16.gmra.mrb[0].mxu0 %v513
        %v767 = vpop.f32.mrb[0].mxu0
        %v768 = vadd.f32 0.0, %v767
        %v769 = vpop.f32.mrb[0].mxu0
        %v770 = vpop.f32.mrb[0].mxu0
        %v771 = vadd.f32 0.0, %v770
        %v772 = vpop.f32.mrb[0].mxu0
        %773 = vmatprep.mubr.bf16.mxu0 %v516
        %774 = vmatmul.mubr.bf16.gmra.mrb[0].mxu0 %v515
        %v775 = vpop.f32.mrb[0].mxu0
        %v776 = vadd.f32 0.0, %v775
        %v777 = vpop.f32.mrb[0].mxu0
        %v778 = vpop.f32.mrb[0].mxu0
        %v779 = vadd.f32 0.0, %v778
        %v780 = vpop.f32.mrb[0].mxu0
        %781 = vmatprep.mubr.bf16.mxu0 %v518
        %782 = vmatmul.mubr.bf16.gmra.mrb[0].mxu0 %v517
        %v783 = vpop.f32.mrb[0].mxu0
        %v784 = vadd.f32 0.0, %v783
        %v785 = vpop.f32.mrb[0].mxu0
        %v786 = vpop.f32.mrb[0].mxu0
        %v787 = vadd.f32 0.0, %v786
        %v788 = vpop.f32.mrb[0].mxu0
        %789 = vmatprep.mubr.bf16.mxu0 %v520
        %790 = vmatmul.mubr.bf16.gmra.mrb[0].mxu0 %v519
        %v791 = vpop.f32.mrb[0].mxu0
        %v792 = vadd.f32 0.0, %v791
        %v793 = vpop.f32.mrb[0].mxu0
        %v794 = vpop.f32.mrb[0].mxu0
        %v795 = vadd.f32 0.0, %v794
        %v796 = vpop.f32.mrb[0].mxu0
        %797 = vmatprep.mubr.bf16.mxu0 %v522
        %798 = vmatmul.mubr.bf16.gmra.mrb[0].mxu0 %v521
        %v799 = vpop.f32.mrb[0].mxu0
        %v800 = vadd.f32 0.0, %v799
        %v801 = vpop.f32.mrb[0].mxu0
        %v802 = vpop.f32.mrb[0].mxu0
        %v803 = vadd.f32 0.0, %v802
        %v804 = vpop.f32.mrb[0].mxu0
        %805 = vmatprep.mubr.bf16.mxu0 %v524
        %806 = vmatmul.mubr.bf16.gmra.mrb[0].mxu0 %v523
        %v807 = vpop.f32.mrb[0].mxu0
        %v808 = vadd.f32 0.0, %v807
        %v809 = vpop.f32.mrb[0].mxu0
        %v810 = vpop.f32.mrb[0].mxu0
        %v811 = vadd.f32 0.0, %v810
        %v812 = vpop.f32.mrb[0].mxu0
        %813 = vdwg.mxu0
        %v814 = vadd.f32 %v301, %v688
        %v815 = vadd.f32 %v302, %v691
        %v816 = vadd.f32 %v303, %v696
        %v817 = vadd.f32 %v304, %v699
        %v818 = vadd.f32 %v305, %v704
        %v819 = vadd.f32 %v306, %v707
        %v820 = vadd.f32 %v307, %v712
        %v821 = vadd.f32 %v308, %v715
        %v822 = vadd.f32 %v309, %v720
        %v823 = vadd.f32 %v310, %v723
        %v824 = vadd.f32 %v311, %v728
        %v825 = vadd.f32 %v312, %v731
        %v826 = vadd.f32 %v313, %v736
        %v827 = vadd.f32 %v314, %v739
        %v828 = vadd.f32 %v315, %v744
        %v829 = vadd.f32 %v316, %v747
        %v830 = vadd.f32 %v317, %v752
        %v831 = vadd.f32 %v318, %v755
        %v832 = vadd.f32 %v319, %v760
        %v833 = vadd.f32 %v320, %v763
        %v834 = vadd.f32 %v321, %v768
        %v835 = vadd.f32 %v322, %v771
        %v836 = vadd.f32 %v323, %v776
        %v837 = vadd.f32 %v324, %v779
        %v838 = vadd.f32 %v325, %v784
        %v839 = vadd.f32 %v326, %v787
        %v840 = vadd.f32 %v327, %v792
        %v841 = vadd.f32 %v328, %v795
        %v842 = vadd.f32 %v329, %v800
        %v843 = vadd.f32 %v330, %v803
        %v844 = vadd.f32 %v331, %v808
        %v845 = vadd.f32 %v332, %v811
        %846 = vst [vmem:[%s259] sm:$0xff] %v814
        %847 = vst [vmem:[%s259 + $0x8] sm:$0xff] %v815
        %848 = vst [vmem:[%s259 + $0x10] sm:$0xff] %v816
        %849 = vst [vmem:[%s259 + $0x18] sm:$0xff] %v817
        %850 = vst [vmem:[%s259 + $0x20] sm:$0xff] %v818
        %851 = vst [vmem:[%s259 + $0x28] sm:$0xff] %v819
        %852 = vst [vmem:[%s259 + $0x30] sm:$0xff] %v820
        %853 = vst [vmem:[%s259 + $0x38] sm:$0xff] %v821
        %854 = vst [vmem:[%s259 + $0x40] sm:$0xff] %v822
        %855 = vst [vmem:[%s259 + $0x48] sm:$0xff] %v823
        %856 = vst [vmem:[%s259 + $0x50] sm:$0xff] %v824
        %857 = vst [vmem:[%s259 + $0x58] sm:$0xff] %v825
        %858 = vst [vmem:[%s259 + $0x60] sm:$0xff] %v826
        %859 = vst [vmem:[%s259 + $0x68] sm:$0xff] %v827
        %860 = vst [vmem:[%s259 + $0x70] sm:$0xff] %v828
        %861 = vst [vmem:[%s259 + $0x78] sm:$0xff] %v829
        %862 = vst [vmem:[%s259 + $0x80] sm:$0xff] %v830
        %863 = vst [vmem:[%s259 + $0x88] sm:$0xff] %v831
        %864 = vst [vmem:[%s259 + $0x90] sm:$0xff] %v832
        %865 = vst [vmem:[%s259 + $0x98] sm:$0xff] %v833
        %866 = vst [vmem:[%s259 + $0xa0] sm:$0xff] %v834
        %867 = vst [vmem:[%s259 + $0xa8] sm:$0xff] %v835
        %868 = vst [vmem:[%s259 + $0xb0] sm:$0xff] %v836
        %869 = vst [vmem:[%s259 + $0xb8] sm:$0xff] %v837
        %870 = vst [vmem:[%s259 + $0xc0] sm:$0xff] %v838
        %871 = vst [vmem:[%s259 + $0xc8] sm:$0xff] %v839
        %872 = vst [vmem:[%s259 + $0xd0] sm:$0xff] %v840
        %873 = vst [vmem:[%s259 + $0xd8] sm:$0xff] %v841
        %874 = vst [vmem:[%s259 + $0xe0] sm:$0xff] %v842
        %875 = vst [vmem:[%s259 + $0xe8] sm:$0xff] %v843
        %876 = vst [vmem:[%s259 + $0xf0] sm:$0xff] %v844
        %877 = vst [vmem:[%s259 + $0xf8] sm:$0xff] %v845
        // Predicated region
        $region49: #{conv2d_fused.1} parent=31 // pred_check
          %p878 = pneg %p265
        $region50: #{conv2d_fused.1} parent=31 // pred_check_branch
          %880 = sbr.rel (%p878) target = $region52
        $region51: #{conv2d_fused.1} parent=31 // pred_region
          %v881 = vld [vmem:[%s259] sm:$0xff]
          %v882 = vld [vmem:[%s259 + $0x8] sm:$0xff]
          %v883 = vld [vmem:[%s259 + $0x10] sm:$0xff]
          %v884 = vld [vmem:[%s259 + $0x18] sm:$0xff]
          %v885 = vld [vmem:[%s259 + $0x20] sm:$0xff]
          %v886 = vld [vmem:[%s259 + $0x28] sm:$0xff]
          %v887 = vld [vmem:[%s259 + $0x30] sm:$0xff]
          %v888 = vld [vmem:[%s259 + $0x38] sm:$0xff]
          %v889 = vld [vmem:[%s259 + $0x40] sm:$0xff]
          %v890 = vld [vmem:[%s259 + $0x48] sm:$0xff]
          %v891 = vld [vmem:[%s259 + $0x50] sm:$0xff]
          %v892 = vld [vmem:[%s259 + $0x58] sm:$0xff]
          %v893 = vld [vmem:[%s259 + $0x60] sm:$0xff]
          %v894 = vld [vmem:[%s259 + $0x68] sm:$0xff]
          %v895 = vld [vmem:[%s259 + $0x70] sm:$0xff]
          %v896 = vld [vmem:[%s259 + $0x78] sm:$0xff]
          %v897 = vld [vmem:[%s259 + $0x80] sm:$0xff]
          %v898 = vld [vmem:[%s259 + $0x88] sm:$0xff]
          %v899 = vld [vmem:[%s259 + $0x90] sm:$0xff]
          %v900 = vld [vmem:[%s259 + $0x98] sm:$0xff]
          %v901 = vld [vmem:[%s259 + $0xa0] sm:$0xff]
          %v902 = vld [vmem:[%s259 + $0xa8] sm:$0xff]
          %v903 = vld [vmem:[%s259 + $0xb0] sm:$0xff]
          %v904 = vld [vmem:[%s259 + $0xb8] sm:$0xff]
          %v905 = vld [vmem:[%s259 + $0xc0] sm:$0xff]
          %v906 = vld [vmem:[%s259 + $0xc8] sm:$0xff]
          %v907 = vld [vmem:[%s259 + $0xd0] sm:$0xff]
          %v908 = vld [vmem:[%s259 + $0xd8] sm:$0xff]
          %v909 = vld [vmem:[%s259 + $0xe0] sm:$0xff]
          %v910 = vld [vmem:[%s259 + $0xe8] sm:$0xff]
          %v911 = vld [vmem:[%s259 + $0xf0] sm:$0xff]
          %v912 = vld [vmem:[%s259 + $0xf8] sm:$0xff]
          %v913 = vld [vmem:[#allocation7] sm:$0x1]
          %v915 = vlaneseq
          %v916 = vshrl.u32 %v915, 7
          %v917 = vsub.s32 0, %v916
          %v918 = vrot.slane %v913, %v917
          %v920 = vadd.f32 %v881, %v918
          %v921 = vadd.f32 %v882, %v918
          %v922 = vadd.f32 %v883, %v918
          %v923 = vadd.f32 %v884, %v918
          %v924 = vadd.f32 %v885, %v918
          %v925 = vadd.f32 %v886, %v918
          %v926 = vadd.f32 %v887, %v918
          %v927 = vadd.f32 %v888, %v918
          %v928 = vadd.f32 %v889, %v918
          %v929 = vadd.f32 %v890, %v918
          %v930 = vadd.f32 %v891, %v918
          %v931 = vadd.f32 %v892, %v918
          %v932 = vadd.f32 %v893, %v918
          %v933 = vadd.f32 %v894, %v918
          %v934 = vadd.f32 %v895, %v918
          %v935 = vadd.f32 %v896, %v918
          %v936 = vadd.f32 %v897, %v918
          %v937 = vadd.f32 %v898, %v918
          %v938 = vadd.f32 %v899, %v918
          %v939 = vadd.f32 %v900, %v918
          %v940 = vadd.f32 %v901, %v918
          %v941 = vadd.f32 %v902, %v918
          %v942 = vadd.f32 %v903, %v918
          %v943 = vadd.f32 %v904, %v918
          %v944 = vadd.f32 %v905, %v918
          %v945 = vadd.f32 %v906, %v918
          %v946 = vadd.f32 %v907, %v918
          %v947 = vadd.f32 %v908, %v918
          %v948 = vadd.f32 %v909, %v918
          %v949 = vadd.f32 %v910, %v918
          %v950 = vadd.f32 %v911, %v918
          %v951 = vadd.f32 %v912, %v918
          %v952 = vmax.f32 %v920, 0.0
          %v953 = vmax.f32 %v921, 0.0
          %v954 = vmax.f32 %v922, 0.0
          %v955 = vmax.f32 %v923, 0.0
          %v956 = vmax.f32 %v924, 0.0
          %v957 = vmax.f32 %v925, 0.0
          %v958 = vmax.f32 %v926, 0.0
          %v959 = vmax.f32 %v927, 0.0
          %v960 = vmax.f32 %v928, 0.0
          %v961 = vmax.f32 %v929, 0.0
          %v962 = vmax.f32 %v930, 0.0
          %v963 = vmax.f32 %v931, 0.0
          %v964 = vmax.f32 %v932, 0.0
          %v965 = vmax.f32 %v933, 0.0
          %v966 = vmax.f32 %v934, 0.0
          %v967 = vmax.f32 %v935, 0.0
          %v968 = vmax.f32 %v936, 0.0
          %v969 = vmax.f32 %v937, 0.0
          %v970 = vmax.f32 %v938, 0.0
          %v971 = vmax.f32 %v939, 0.0
          %v972 = vmax.f32 %v940, 0.0
          %v973 = vmax.f32 %v941, 0.0
          %v974 = vmax.f32 %v942, 0.0
          %v975 = vmax.f32 %v943, 0.0
          %v976 = vmax.f32 %v944, 0.0
          %v977 = vmax.f32 %v945, 0.0
          %v978 = vmax.f32 %v946, 0.0
          %v979 = vmax.f32 %v947, 0.0
          %v980 = vmax.f32 %v948, 0.0
          %v981 = vmax.f32 %v949, 0.0
          %v982 = vmax.f32 %v950, 0.0
          %v983 = vmax.f32 %v951, 0.0
          %984 = vst [vmem:[%s259] sm:$0xff] %v952
          %985 = vst [vmem:[%s259 + $0x8] sm:$0xff] %v953
          %986 = vst [vmem:[%s259 + $0x10] sm:$0xff] %v954
          %987 = vst [vmem:[%s259 + $0x18] sm:$0xff] %v955
          %988 = vst [vmem:[%s259 + $0x20] sm:$0xff] %v956
          %989 = vst [vmem:[%s259 + $0x28] sm:$0xff] %v957
          %990 = vst [vmem:[%s259 + $0x30] sm:$0xff] %v958
          %991 = vst [vmem:[%s259 + $0x38] sm:$0xff] %v959
          %992 = vst [vmem:[%s259 + $0x40] sm:$0xff] %v960
          %993 = vst [vmem:[%s259 + $0x48] sm:$0xff] %v961
          %994 = vst [vmem:[%s259 + $0x50] sm:$0xff] %v962
          %995 = vst [vmem:[%s259 + $0x58] sm:$0xff] %v963
          %996 = vst [vmem:[%s259 + $0x60] sm:$0xff] %v964
          %997 = vst [vmem:[%s259 + $0x68] sm:$0xff] %v965
          %998 = vst [vmem:[%s259 + $0x70] sm:$0xff] %v966
          %999 = vst [vmem:[%s259 + $0x78] sm:$0xff] %v967
          %1000 = vst [vmem:[%s259 + $0x80] sm:$0xff] %v968
          %1001 = vst [vmem:[%s259 + $0x88] sm:$0xff] %v969
          %1002 = vst [vmem:[%s259 + $0x90] sm:$0xff] %v970
          %1003 = vst [vmem:[%s259 + $0x98] sm:$0xff] %v971
          %1004 = vst [vmem:[%s259 + $0xa0] sm:$0xff] %v972
          %1005 = vst [vmem:[%s259 + $0xa8] sm:$0xff] %v973
          %1006 = vst [vmem:[%s259 + $0xb0] sm:$0xff] %v974
          %1007 = vst [vmem:[%s259 + $0xb8] sm:$0xff] %v975
          %1008 = vst [vmem:[%s259 + $0xc0] sm:$0xff] %v976
          %1009 = vst [vmem:[%s259 + $0xc8] sm:$0xff] %v977
          %1010 = vst [vmem:[%s259 + $0xd0] sm:$0xff] %v978
          %1011 = vst [vmem:[%s259 + $0xd8] sm:$0xff] %v979
          %1012 = vst [vmem:[%s259 + $0xe0] sm:$0xff] %v980
          %1013 = vst [vmem:[%s259 + $0xe8] sm:$0xff] %v981
          %1014 = vst [vmem:[%s259 + $0xf0] sm:$0xff] %v982
          %1015 = vst [vmem:[%s259 + $0xf8] sm:$0xff] %v983
        $region52: #{conv2d_fused.1} parent=31 // pred_fallthru
          _
        %s1016 = sand.u32 %s132, 1
        %s1017 = scalar_lea.sflag [#allocation4], %s1016
        %s1018 = sand.u32 %s132, 1
        %s1019 = smul.addr %s1018, 256
        %s1020 = scalar_lea.vmem [#allocation8], %s1019
        // Predicated region
        $region53: #{conv2d_fused.1} parent=31 // pred_check
          %p1021 = pneg %p142
        $region54: #{conv2d_fused.1} parent=31 // pred_check_branch
          %1023 = sbr.rel (%p1021) target = $region56
        $region55: #{conv2d_fused.1} parent=31 // pred_region
          %s1024 = smul.u32 32, %s26
          %s1026 = ssub.s32 4096, 4096
          %1027 = vsyncadd %s1017, %s1026
          %s1028 = sadd.s32 %s27, %s1024
          %s1029 = smul.addr %s1028, 128
          %s1030 = scalar_lea.hbm %s3, %s1029
          %s1031 = sshll.u32 %s1020, 4
          %s1032 = int_to_ptr.vmem [resolvable:$true] %s1031
          %1037 = dma.vmem_to_hbm [thread:$0]  %s1032, 4096, %s1030, %s1017, 128, 128, 8
        $region56: #{conv2d_fused.1} parent=31 // pred_fallthru
          _
      $region32: #{conv2d_fused.1} parent=5 // pred_fallthru
        _
      %p1038 = scmp.le.s32.totalorder 2, %s16
      // Predicated region
      $region57: #{conv2d_fused.1} parent=5 // pred_check
        %p1039 = pneg %p1038
      $region58: #{conv2d_fused.1} parent=5 // pred_check_branch
        %1041 = sbr.rel (%p1039) target = $region60
      $region59: #{conv2d_fused.1} parent=5 // pred_region
        %s1042 = ssub.s32 %s16, 2
        // Predicated region
        $region61: #{conv2d_fused.1} parent=59 // pred_check
          %p1043 = pneg %p148
        $region62: #{conv2d_fused.1} parent=59 // pred_check_branch
          %1045 = sbr.rel (%p1043) target = $region64
        $region63: #{conv2d_fused.1} parent=59 // pred_region
          %s1046 = sand.u32 %s133, 1
          %s1047 = scalar_lea.sflag [#allocation4], %s1046
          %s1048 = sand.u32 %s133, 1
          %s1049 = smul.addr %s1048, 256
          %s1050 = scalar_lea.vmem [#allocation8], %s1049
          %1051 = dma.done %s1047, 4096
        $region64: #{conv2d_fused.1} parent=59 // pred_fallthru
          _
      $region60: #{conv2d_fused.1} parent=5 // pred_fallthru
        _
    $region6: #{conv2d_fused.1} parent=1 // loop_footer
      %s20 = sadd.s32 1, %s16
    $region7: #{conv2d_fused.1} parent=1 // loop_footer_branch
      %15 = sbr.rel target = $region3
    $region8: #{conv2d_fused.1} parent=1 // loop_exit
      _
    %1052 = vsyncpa [#allocation3], 1
    %s1053 = scalar_lea.sflag [#allocation3], 1
    %1054 = vsyncpa %s1053, 1
    %1055 = vsyncpa [#allocation6], 1
    %1056 = vsyncpa [#allocation4], 1
    %s1057 = scalar_lea.sflag [#allocation4], 1
    %1058 = vsyncpa %s1057, 1

</llo_original>
